<compile_context>
chip_gen: v7x
topology: tpu7x:2x2x1
jax: 0.10.0
libtpu: 0.0.40
codegen_flags: <defaults>
</compile_context>

<pallas_src>
import functools
import math

import jax
import jax.numpy as jnp
from jax import lax
from jax.experimental import pallas as pl
from jax.experimental.pallas import tpu as pltpu

_EPS = 1e-10

# Lanczos (Numerical Recipes, g=5) coefficients.
_LANCZOS_C0 = 1.000000000190015
_LANCZOS_C = (
    76.18009172947146,
    -86.50532032941677,
    24.01409824083091,
    -1.231739572450155,
    0.1208650973866179e-2,
    -0.5395239384953e-5,
)
# Paired partial fractions: c_hi/(z+k1) + c_lo/(z+k2) = (A*z + B)/(z^2 + S*z + Q)
_PAIRS = []
for _k in range(3):
    _chi, _clo = _LANCZOS_C[2 * _k], _LANCZOS_C[2 * _k + 1]
    _k1, _k2 = 2 * _k + 1, 2 * _k + 2
    _PAIRS.append((_chi + _clo, _k2 * _chi + _k1 * _clo,
                   float(_k1 + _k2), float(_k1 * _k2)))
_PAIRS = tuple(_PAIRS)

# For lgamma(a)+lgamma(b)-lgamma(c) with c = a+b-1: the (z+5.5) linear terms
# sum to -6.5 and the three log(sqrt(2*pi)) constants fold to one.
_T1_CONST = math.log(2.5066282746310005) - 6.5


def _round_up(a, b):
    return (a + b - 1) // b * b


def _cdiv(a, b):
    return (a + b - 1) // b


def _lanczos_ser(z):
    """ser(z) = c0 + sum_{k=1..6} c_k/(z+k) for z > 0, via 3 paired partial
    fractions, each (A*z+B) * rcp(z^2 + S*z + Q) with an approx EUP reciprocal.

    Pairing halves the recip count vs the naive 6-term series (and the
    big-magnitude c1/c2 terms partially cancel *before* the recip error
    applies), cuts VALU work vs the suffix-product rational form, and keeps
    every intermediate O(z^2) — no overflow until counts ~2e6 in f32.
    """
    z2 = z * z
    s = jnp.float32(_LANCZOS_C0)
    for an, bn, sc, qc in _PAIRS:
        s = s + (an * z + bn) * pl.reciprocal(z2 + sc * z + qc, approx=True)
    return s


def _zinb_kernel(x_ref, mean_ref, disp_ref, pi_ref, sf_ref, out_ref, *,
                 ridge_lambda, n_true, tile_rows, mask_rows):
    # Load in native dtype, compute in f32.
    x = x_ref[...].astype(jnp.float32)
    disp = disp_ref[...].astype(jnp.float32)
    pi = pi_ref[...].astype(jnp.float32)
    mean = mean_ref[...].astype(jnp.float32) * sf_ref[...].astype(jnp.float32)

    a = disp + _EPS      # lgamma arg 1: disp + eps
    b = x + 1.0          # lgamma arg 2: x + 1
    c = x + a            # lgamma arg 3: x + disp + eps  (= a + b - 1)

    log_disp = jnp.log(a)            # log(disp + eps)   (reused by t1 fold? no: folded in ratio)
    log_mean = jnp.log(mean + _EPS)
    log_dpm = jnp.log(a + mean)      # log(disp + eps + mean)

    # ---- fused t1 = lgamma(a) + lgamma(b) - lgamma(c) ----------------------
    # Per-term Lanczos: lgamma(z) = (z+.5)log(z+5.5) - (z+5.5)
    #                             + log(sqrt(2pi)) + log(ser(z)) - log(z)
    # Linear terms -> -6.5, constants -> _T1_CONST, and the three ser/z
    # factors collapse into ONE log of a grouped, magnitude-bounded ratio.
    ser_ratio = (_lanczos_ser(a) * _lanczos_ser(b)
                 * pl.reciprocal(_lanczos_ser(c), approx=True)
                 * c * pl.reciprocal(a * b, approx=True))
    t1 = ((a + 0.5) * jnp.log(a + 5.5)
          + (b + 0.5) * jnp.log(b + 5.5)
          - (c + 0.5) * jnp.log(c + 5.5)
          + jnp.log(ser_ratio) + _T1_CONST)

    # ---- t2:  (disp+x)*log(1 + mean/(disp+eps)) + x*(log(disp+eps)-log(mean+eps))
    t2 = (disp + x) * (log_dpm - log_disp) + x * (log_disp - log_mean)

    # ---- zero / NB case, single shared log ---------------------------------
    one_minus_pi = 1.0 - pi
    zero_nb = jnp.exp(disp * (log_disp - log_dpm))   # (disp/(disp+mean+eps))**disp
    is_zero = x <= 1e-5
    log_sel = jnp.log(jnp.where(is_zero,
                                pi + one_minus_pi * zero_nb + _EPS,
                                one_minus_pi + _EPS))
    result = jnp.where(is_zero, 0.0, t1 + t2) - log_sel
    if ridge_lambda > 0.0:
        result = result + ridge_lambda * (pi * pi)

    # Fold only the sublane axis here (lane-dense store); the cross-lane /
    # cross-tile reduction and 1/(N*G) happen once in the wrapper.
    if mask_rows:
        last = pl.num_programs(0) - 1
        tile = pl.program_id(0)

        @pl.when(tile != last)
        def _():
            out_ref[0] = jnp.sum(result, axis=0, keepdims=True)

        @pl.when(tile == last)   # only the (partial) last tile pays for masking
        def _():
            row = tile * tile_rows + lax.broadcasted_iota(jnp.int32, result.shape, 0)
            masked = jnp.where(row < n_true, result, 0.0)
            out_ref[0] = jnp.sum(masked, axis=0, keepdims=True)
    else:
        out_ref[0] = jnp.sum(result, axis=0, keepdims=True)


def zinb_loss(x, mean, disp, pi, scale_factor, ridge_lambda=0.0, *,
              target_tile_bytes=None):
    """Mean ZINB negative log-likelihood (matches torch ZINBLoss.forward)."""
    N, G = x.shape
    scale_factor = jnp.asarray(scale_factor)
    if scale_factor.ndim == 0:
        scale_factor = jnp.full((N,), scale_factor, dtype=jnp.float32)
    sf = scale_factor.reshape(N, 1)

    # Sublane granularity: 8 rows for f32 inputs, 32 covers bf16/int8 packing.
    min_itemsize = min(jnp.dtype(t.dtype).itemsize for t in (x, mean, disp, pi))
    sub = 8 if min_itemsize >= 4 else 32

    # Chip-aware per-input tile budget: ~2 MiB on 128 MiB-VMEM chips (v5e/v6e),
    # ~1 MiB on v7x (64 MiB VMEM).
    if target_tile_bytes is None:
        vmem_cap = 64 << 20
        try:
            vmem_cap = int(getattr(pltpu.get_tpu_info(), "vmem_capacity_bytes",
                                   vmem_cap))
        except Exception:
            pass
        target_tile_bytes = (2 << 20) if vmem_cap >= (100 << 20) else (1 << 20)

    bytes_per_row = 4 * G
    max_rows_by_vmem = max(sub, (target_tile_bytes // bytes_per_row) // sub * sub)
    n_ceil = _round_up(N, sub)
    tile_rows = min(n_ceil, max_rows_by_vmem)
    # Keep >= 2 grid steps whenever N allows it so the ("parallel",) axis
    # actually splits across both v7x TensorCores (no effect on v5e/v6e).
    if n_ceil >= 2 * sub:
        tile_rows = min(tile_rows, _round_up(_cdiv(N, 2), sub))
    num_tiles = _cdiv(N, tile_rows)
    mask_rows = (N % tile_rows) != 0     # partial last tile: in-kernel mask, no pad

    # VMEM limit from the actual working set (2x pipeline buffers per input,
    # output blocks, generous headroom for in-kernel f32 temporaries/spills).
    in_tile_bytes = tile_rows * G * sum(
        jnp.dtype(t.dtype).itemsize for t in (x, mean, disp, pi)) + tile_rows * 4
    f32_tile_bytes = tile_rows * G * 4
    vmem_budget = 2 * in_tile_bytes + 2 * G * 4 + 12 * f32_tile_bytes + (2 << 20)
    vmem_limit = int(min(max(vmem_budget, 32 << 20), 56 << 20))

    kernel = functools.partial(
        _zinb_kernel,
        ridge_lambda=float(ridge_lambda),
        n_true=N,
        tile_rows=tile_rows,
        mask_rows=mask_rows,
    )

    row_spec = pl.BlockSpec((tile_rows, G), lambda i: (i, 0))
    # Per-tile lane partial sums: (num_tiles, 1, G) so every block write is
    # lane-dense and the single grid axis is fully parallel (megacore-friendly).
    lane_partials = pl.pallas_call(
        kernel,
        out_shape=jax.ShapeDtypeStruct((num_tiles, 1, G), jnp.float32),
        grid_spec=pltpu.PrefetchScalarGridSpec(
            num_scalar_prefetch=0,
            grid=(num_tiles,),
            in_specs=[
                row_spec,  # x
                row_spec,  # mean
                row_spec,  # disp
                row_spec,  # pi
                pl.BlockSpec((tile_rows, 1), lambda i: (i, 0)),  # scale_factor
            ],
            out_specs=pl.BlockSpec((1, 1, G), lambda i: (i, 0, 0)),
        ),
        compiler_params=pltpu.CompilerParams(
            dimension_semantics=("parallel",),
            vmem_limit_bytes=vmem_limit,
        ),
    )(x, mean, disp, pi, sf)

    loss = jnp.sum(lane_partials) * (1.0 / float(N * G))
    # nan2inf (applied to the reduced mean, as in the torch module).
    return jnp.where(jnp.isnan(loss), jnp.inf, loss)


def _zinb_loss_ref(x, mean, disp, pi, scale_factor, ridge_lambda=0.0):
    """Pure-JAX port of the torch ZINBLoss, for validation."""
    eps = 1e-10
    mean = mean * scale_factor[:, None]
    lg = jax.scipy.special.gammaln
    t1 = lg(disp + eps) + lg(x + 1.0) - lg(x + disp + eps)
    t2 = (disp + x) * jnp.log(1.0 + mean / (disp + eps)) + x * (
        jnp.log(disp + eps) - jnp.log(mean + eps))
    nb_case = t1 + t2 - jnp.log(1.0 - pi + eps)
    zero_nb = jnp.power(disp / (disp + mean + eps), disp)
    zero_case = -jnp.log(pi + (1.0 - pi) * zero_nb + eps)
    result = jnp.where(x <= 1e-5, zero_case, nb_case)
    if ridge_lambda > 0:
        result = result + ridge_lambda * jnp.square(pi)
    result = jnp.mean(result)
    return jnp.where(jnp.isnan(result), jnp.inf, result)


if __name__ == "__main__":
    key = jax.random.PRNGKey(0)
    k1, k2, k3, k4, k5 = jax.random.split(key, 5)

    N, G = 16, 128  # cells x genes (small demo shape)
    x = jax.random.randint(k1, (N, G), 0, 20).astype(jnp.float32)
    mean = jax.random.uniform(k2, (N, G), minval=0.5, maxval=5.0, dtype=jnp.float32)
    disp = jax.random.uniform(k3, (N, G), minval=0.5, maxval=2.0, dtype=jnp.float32)
    pi = jax.random.uniform(k4, (N, G), minval=0.05, maxval=0.9, dtype=jnp.float32)
    scale_factor = jax.random.uniform(k5, (N,), minval=0.5, maxval=1.5, dtype=jnp.float32)

    loss = zinb_loss(x, mean, disp, pi, scale_factor, ridge_lambda=0.0)
    loss_ridge = zinb_loss(x, mean, disp, pi, scale_factor, ridge_lambda=0.1)
    jax.block_until_ready((loss, loss_ridge))

    ref = _zinb_loss_ref(x, mean, disp, pi, scale_factor, 0.0)
    ref_ridge = _zinb_loss_ref(x, mean, disp, pi, scale_factor, 0.1)
    assert jnp.allclose(loss, ref, rtol=2e-3, atol=2e-3), (loss, ref)
    assert jnp.allclose(loss_ridge, ref_ridge, rtol=2e-3, atol=2e-3), (loss_ridge, ref_ridge)

    print("KERNEL_OK")
</pallas_src>

<mosaic_0001>
module attributes {stable_mosaic.version = 11 : i64} {
  func.func @_zinb_kernel(%arg0: i32, %arg1: memref<8x128xf32, #tpu.memory_space<vmem>>, %arg2: memref<8x128xf32, #tpu.memory_space<vmem>>, %arg3: memref<8x128xf32, #tpu.memory_space<vmem>>, %arg4: memref<8x128xf32, #tpu.memory_space<vmem>>, %arg5: memref<8x1xf32, #tpu.memory_space<vmem>>, %arg6: memref<1x1x128xf32, #tpu.memory_space<vmem>>) attributes {dimension_semantics = [#tpu.dimension_semantics<parallel>], iteration_bounds = array<i64: 2>, scalar_prefetch = 0 : i64, scratch_operands = 0 : i64, tpu.core_type = #tpu.core_type<tc>, window_params = [{transform_indices = @transform_0, window_bounds = array<i64: 8, 128>}, {transform_indices = @transform_1, window_bounds = array<i64: 8, 128>}, {transform_indices = @transform_2, window_bounds = array<i64: 8, 128>}, {transform_indices = @transform_3, window_bounds = array<i64: 8, 128>}, {transform_indices = @transform_4, window_bounds = array<i64: 8, 1>}, {transform_indices = @transform_5, window_bounds = array<i64: 1, 1, 128>}]} {
    %c0 = arith.constant 0 : index
    %c0_0 = arith.constant 0 : index
    %0 = vector.load %arg1[%c0, %c0_0] : memref<8x128xf32, #tpu.memory_space<vmem>>, vector<8x128xf32>
    %c0_1 = arith.constant 0 : index
    %c0_2 = arith.constant 0 : index
    %1 = vector.load %arg3[%c0_1, %c0_2] : memref<8x128xf32, #tpu.memory_space<vmem>>, vector<8x128xf32>
    %c0_3 = arith.constant 0 : index
    %c0_4 = arith.constant 0 : index
    %2 = vector.load %arg4[%c0_3, %c0_4] : memref<8x128xf32, #tpu.memory_space<vmem>>, vector<8x128xf32>
    %c0_5 = arith.constant 0 : index
    %c0_6 = arith.constant 0 : index
    %3 = vector.load %arg2[%c0_5, %c0_6] : memref<8x128xf32, #tpu.memory_space<vmem>>, vector<8x128xf32>
    %c0_7 = arith.constant 0 : index
    %c0_8 = arith.constant 0 : index
    %4 = vector.load %arg5[%c0_7, %c0_8] : memref<8x1xf32, #tpu.memory_space<vmem>>, vector<8x1xf32>
    %5 = vector.broadcast %4 : vector<8x1xf32> to vector<8x128xf32>
    %6 = arith.mulf %3, %5 : vector<8x128xf32>
    %cst = arith.constant 1.000000e-10 : f32
    %7 = vector.broadcast %cst : f32 to vector<8x128xf32>
    %8 = arith.addf %1, %7 : vector<8x128xf32>
    %cst_9 = arith.constant 1.000000e+00 : f32
    %9 = vector.broadcast %cst_9 : f32 to vector<8x128xf32>
    %10 = arith.addf %0, %9 : vector<8x128xf32>
    %11 = arith.addf %0, %8 : vector<8x128xf32>
    %12 = math.log %8 : vector<8x128xf32>
    %cst_10 = arith.constant 1.000000e-10 : f32
    %13 = vector.broadcast %cst_10 : f32 to vector<8x128xf32>
    %14 = arith.addf %6, %13 : vector<8x128xf32>
    %15 = math.log %14 : vector<8x128xf32>
    %16 = arith.addf %8, %6 : vector<8x128xf32>
    %17 = math.log %16 : vector<8x128xf32>
    %18 = arith.mulf %8, %8 : vector<8x128xf32>
    %cst_11 = arith.constant -10.3252287 : f32
    %19 = vector.broadcast %cst_11 : f32 to vector<8x128xf32>
    %20 = arith.mulf %19, %8 : vector<8x128xf32>
    %cst_12 = arith.constant 65.854866 : f32
    %21 = vector.broadcast %cst_12 : f32 to vector<8x128xf32>
    %22 = arith.addf %20, %21 : vector<8x128xf32>
    %cst_13 = arith.constant 3.000000e+00 : f32
    %23 = vector.broadcast %cst_13 : f32 to vector<8x128xf32>
    %24 = arith.mulf %23, %8 : vector<8x128xf32>
    %25 = arith.addf %18, %24 : vector<8x128xf32>
    %cst_14 = arith.constant 2.000000e+00 : f32
    %26 = vector.broadcast %cst_14 : f32 to vector<8x128xf32>
    %27 = arith.addf %25, %26 : vector<8x128xf32>
    %28 = tpu.reciprocal %27 {approx = true} : vector<8x128xf32> -> vector<8x128xf32>
    %29 = arith.mulf %22, %28 : vector<8x128xf32>
    %cst_15 = arith.constant 1.000000e+00 : f32
    %30 = vector.broadcast %cst_15 : f32 to vector<8x128xf32>
    %31 = arith.addf %30, %29 : vector<8x128xf32>
    %cst_16 = arith.constant 22.7823582 : f32
    %32 = vector.broadcast %cst_16 : f32 to vector<8x128xf32>
    %33 = arith.mulf %32, %8 : vector<8x128xf32>
    %cst_17 = arith.constant 92.3611755 : f32
    %34 = vector.broadcast %cst_17 : f32 to vector<8x128xf32>
    %35 = arith.addf %33, %34 : vector<8x128xf32>
    %cst_18 = arith.constant 7.000000e+00 : f32
    %36 = vector.broadcast %cst_18 : f32 to vector<8x128xf32>
    %37 = arith.mulf %36, %8 : vector<8x128xf32>
    %38 = arith.addf %18, %37 : vector<8x128xf32>
    %cst_19 = arith.constant 1.200000e+01 : f32
    %39 = vector.broadcast %cst_19 : f32 to vector<8x128xf32>
    %40 = arith.addf %38, %39 : vector<8x128xf32>
    %41 = tpu.reciprocal %40 {approx = true} : vector<8x128xf32> -> vector<8x128xf32>
    %42 = arith.mulf %35, %41 : vector<8x128xf32>
    %43 = arith.addf %31, %42 : vector<8x128xf32>
    %cst_20 = arith.constant 0.00120325573 : f32
    %44 = vector.broadcast %cst_20 : f32 to vector<8x128xf32>
    %45 = arith.mulf %44, %8 : vector<8x128xf32>
    %cst_21 = arith.constant 0.00722492952 : f32
    %46 = vector.broadcast %cst_21 : f32 to vector<8x128xf32>
    %47 = arith.addf %45, %46 : vector<8x128xf32>
    %cst_22 = arith.constant 1.100000e+01 : f32
    %48 = vector.broadcast %cst_22 : f32 to vector<8x128xf32>
    %49 = arith.mulf %48, %8 : vector<8x128xf32>
    %50 = arith.addf %18, %49 : vector<8x128xf32>
    %cst_23 = arith.constant 3.000000e+01 : f32
    %51 = vector.broadcast %cst_23 : f32 to vector<8x128xf32>
    %52 = arith.addf %50, %51 : vector<8x128xf32>
    %53 = tpu.reciprocal %52 {approx = true} : vector<8x128xf32> -> vector<8x128xf32>
    %54 = arith.mulf %47, %53 : vector<8x128xf32>
    %55 = arith.addf %43, %54 : vector<8x128xf32>
    %56 = arith.mulf %10, %10 : vector<8x128xf32>
    %cst_24 = arith.constant -10.3252287 : f32
    %57 = vector.broadcast %cst_24 : f32 to vector<8x128xf32>
    %58 = arith.mulf %57, %10 : vector<8x128xf32>
    %cst_25 = arith.constant 65.854866 : f32
    %59 = vector.broadcast %cst_25 : f32 to vector<8x128xf32>
    %60 = arith.addf %58, %59 : vector<8x128xf32>
    %cst_26 = arith.constant 3.000000e+00 : f32
    %61 = vector.broadcast %cst_26 : f32 to vector<8x128xf32>
    %62 = arith.mulf %61, %10 : vector<8x128xf32>
    %63 = arith.addf %56, %62 : vector<8x128xf32>
    %cst_27 = arith.constant 2.000000e+00 : f32
    %64 = vector.broadcast %cst_27 : f32 to vector<8x128xf32>
    %65 = arith.addf %63, %64 : vector<8x128xf32>
    %66 = tpu.reciprocal %65 {approx = true} : vector<8x128xf32> -> vector<8x128xf32>
    %67 = arith.mulf %60, %66 : vector<8x128xf32>
    %cst_28 = arith.constant 1.000000e+00 : f32
    %68 = vector.broadcast %cst_28 : f32 to vector<8x128xf32>
    %69 = arith.addf %68, %67 : vector<8x128xf32>
    %cst_29 = arith.constant 22.7823582 : f32
    %70 = vector.broadcast %cst_29 : f32 to vector<8x128xf32>
    %71 = arith.mulf %70, %10 : vector<8x128xf32>
    %cst_30 = arith.constant 92.3611755 : f32
    %72 = vector.broadcast %cst_30 : f32 to vector<8x128xf32>
    %73 = arith.addf %71, %72 : vector<8x128xf32>
    %cst_31 = arith.constant 7.000000e+00 : f32
    %74 = vector.broadcast %cst_31 : f32 to vector<8x128xf32>
    %75 = arith.mulf %74, %10 : vector<8x128xf32>
    %76 = arith.addf %56, %75 : vector<8x128xf32>
    %cst_32 = arith.constant 1.200000e+01 : f32
    %77 = vector.broadcast %cst_32 : f32 to vector<8x128xf32>
    %78 = arith.addf %76, %77 : vector<8x128xf32>
    %79 = tpu.reciprocal %78 {approx = true} : vector<8x128xf32> -> vector<8x128xf32>
    %80 = arith.mulf %73, %79 : vector<8x128xf32>
    %81 = arith.addf %69, %80 : vector<8x128xf32>
    %cst_33 = arith.constant 0.00120325573 : f32
    %82 = vector.broadcast %cst_33 : f32 to vector<8x128xf32>
    %83 = arith.mulf %82, %10 : vector<8x128xf32>
    %cst_34 = arith.constant 0.00722492952 : f32
    %84 = vector.broadcast %cst_34 : f32 to vector<8x128xf32>
    %85 = arith.addf %83, %84 : vector<8x128xf32>
    %cst_35 = arith.constant 1.100000e+01 : f32
    %86 = vector.broadcast %cst_35 : f32 to vector<8x128xf32>
    %87 = arith.mulf %86, %10 : vector<8x128xf32>
    %88 = arith.addf %56, %87 : vector<8x128xf32>
    %cst_36 = arith.constant 3.000000e+01 : f32
    %89 = vector.broadcast %cst_36 : f32 to vector<8x128xf32>
    %90 = arith.addf %88, %89 : vector<8x128xf32>
    %91 = tpu.reciprocal %90 {approx = true} : vector<8x128xf32> -> vector<8x128xf32>
    %92 = arith.mulf %85, %91 : vector<8x128xf32>
    %93 = arith.addf %81, %92 : vector<8x128xf32>
    %94 = arith.mulf %55, %93 : vector<8x128xf32>
    %95 = arith.mulf %11, %11 : vector<8x128xf32>
    %cst_37 = arith.constant -10.3252287 : f32
    %96 = vector.broadcast %cst_37 : f32 to vector<8x128xf32>
    %97 = arith.mulf %96, %11 : vector<8x128xf32>
    %cst_38 = arith.constant 65.854866 : f32
    %98 = vector.broadcast %cst_38 : f32 to vector<8x128xf32>
    %99 = arith.addf %97, %98 : vector<8x128xf32>
    %cst_39 = arith.constant 3.000000e+00 : f32
    %100 = vector.broadcast %cst_39 : f32 to vector<8x128xf32>
    %101 = arith.mulf %100, %11 : vector<8x128xf32>
    %102 = arith.addf %95, %101 : vector<8x128xf32>
    %cst_40 = arith.constant 2.000000e+00 : f32
    %103 = vector.broadcast %cst_40 : f32 to vector<8x128xf32>
    %104 = arith.addf %102, %103 : vector<8x128xf32>
    %105 = tpu.reciprocal %104 {approx = true} : vector<8x128xf32> -> vector<8x128xf32>
    %106 = arith.mulf %99, %105 : vector<8x128xf32>
    %cst_41 = arith.constant 1.000000e+00 : f32
    %107 = vector.broadcast %cst_41 : f32 to vector<8x128xf32>
    %108 = arith.addf %107, %106 : vector<8x128xf32>
    %cst_42 = arith.constant 22.7823582 : f32
    %109 = vector.broadcast %cst_42 : f32 to vector<8x128xf32>
    %110 = arith.mulf %109, %11 : vector<8x128xf32>
    %cst_43 = arith.constant 92.3611755 : f32
    %111 = vector.broadcast %cst_43 : f32 to vector<8x128xf32>
    %112 = arith.addf %110, %111 : vector<8x128xf32>
    %cst_44 = arith.constant 7.000000e+00 : f32
    %113 = vector.broadcast %cst_44 : f32 to vector<8x128xf32>
    %114 = arith.mulf %113, %11 : vector<8x128xf32>
    %115 = arith.addf %95, %114 : vector<8x128xf32>
    %cst_45 = arith.constant 1.200000e+01 : f32
    %116 = vector.broadcast %cst_45 : f32 to vector<8x128xf32>
    %117 = arith.addf %115, %116 : vector<8x128xf32>
    %118 = tpu.reciprocal %117 {approx = true} : vector<8x128xf32> -> vector<8x128xf32>
    %119 = arith.mulf %112, %118 : vector<8x128xf32>
    %120 = arith.addf %108, %119 : vector<8x128xf32>
    %cst_46 = arith.constant 0.00120325573 : f32
    %121 = vector.broadcast %cst_46 : f32 to vector<8x128xf32>
    %122 = arith.mulf %121, %11 : vector<8x128xf32>
    %cst_47 = arith.constant 0.00722492952 : f32
    %123 = vector.broadcast %cst_47 : f32 to vector<8x128xf32>
    %124 = arith.addf %122, %123 : vector<8x128xf32>
    %cst_48 = arith.constant 1.100000e+01 : f32
    %125 = vector.broadcast %cst_48 : f32 to vector<8x128xf32>
    %126 = arith.mulf %125, %11 : vector<8x128xf32>
    %127 = arith.addf %95, %126 : vector<8x128xf32>
    %cst_49 = arith.constant 3.000000e+01 : f32
    %128 = vector.broadcast %cst_49 : f32 to vector<8x128xf32>
    %129 = arith.addf %127, %128 : vector<8x128xf32>
    %130 = tpu.reciprocal %129 {approx = true} : vector<8x128xf32> -> vector<8x128xf32>
    %131 = arith.mulf %124, %130 : vector<8x128xf32>
    %132 = arith.addf %120, %131 : vector<8x128xf32>
    %133 = tpu.reciprocal %132 {approx = true} : vector<8x128xf32> -> vector<8x128xf32>
    %134 = arith.mulf %94, %133 : vector<8x128xf32>
    %135 = arith.mulf %134, %11 : vector<8x128xf32>
    %136 = arith.mulf %8, %10 : vector<8x128xf32>
    %137 = tpu.reciprocal %136 {approx = true} : vector<8x128xf32> -> vector<8x128xf32>
    %138 = arith.mulf %135, %137 : vector<8x128xf32>
    %cst_50 = arith.constant 5.000000e-01 : f32
    %139 = vector.broadcast %cst_50 : f32 to vector<8x128xf32>
    %140 = arith.addf %8, %139 : vector<8x128xf32>
    %cst_51 = arith.constant 5.500000e+00 : f32
    %141 = vector.broadcast %cst_51 : f32 to vector<8x128xf32>
    %142 = arith.addf %8, %141 : vector<8x128xf32>
    %143 = math.log %142 : vector<8x128xf32>
    %144 = arith.mulf %140, %143 : vector<8x128xf32>
    %cst_52 = arith.constant 5.000000e-01 : f32
    %145 = vector.broadcast %cst_52 : f32 to vector<8x128xf32>
    %146 = arith.addf %10, %145 : vector<8x128xf32>
    %cst_53 = arith.constant 5.500000e+00 : f32
    %147 = vector.broadcast %cst_53 : f32 to vector<8x128xf32>
    %148 = arith.addf %10, %147 : vector<8x128xf32>
    %149 = math.log %148 : vector<8x128xf32>
    %150 = arith.mulf %146, %149 : vector<8x128xf32>
    %151 = arith.addf %144, %150 : vector<8x128xf32>
    %cst_54 = arith.constant 5.000000e-01 : f32
    %152 = vector.broadcast %cst_54 : f32 to vector<8x128xf32>
    %153 = arith.addf %11, %152 : vector<8x128xf32>
    %cst_55 = arith.constant 5.500000e+00 : f32
    %154 = vector.broadcast %cst_55 : f32 to vector<8x128xf32>
    %155 = arith.addf %11, %154 : vector<8x128xf32>
    %156 = math.log %155 : vector<8x128xf32>
    %157 = arith.mulf %153, %156 : vector<8x128xf32>
    %158 = arith.subf %151, %157 : vector<8x128xf32>
    %159 = math.log %138 : vector<8x128xf32>
    %160 = arith.addf %158, %159 : vector<8x128xf32>
    %cst_56 = arith.constant -5.58106136 : f32
    %161 = vector.broadcast %cst_56 : f32 to vector<8x128xf32>
    %162 = arith.addf %160, %161 : vector<8x128xf32>
    %163 = arith.addf %1, %0 : vector<8x128xf32>
    %164 = arith.subf %17, %12 : vector<8x128xf32>
    %165 = arith.mulf %163, %164 : vector<8x128xf32>
    %166 = arith.subf %12, %15 : vector<8x128xf32>
    %167 = arith.mulf %0, %166 : vector<8x128xf32>
    %168 = arith.addf %165, %167 : vector<8x128xf32>
    %cst_57 = arith.constant 1.000000e+00 : f32
    %169 = vector.broadcast %cst_57 : f32 to vector<8x128xf32>
    %170 = arith.subf %169, %2 : vector<8x128xf32>
    %171 = arith.subf %12, %17 : vector<8x128xf32>
    %172 = arith.mulf %1, %171 : vector<8x128xf32>
    %173 = math.exp %172 : vector<8x128xf32>
    %cst_58 = arith.constant 9.99999974E-6 : f32
    %174 = vector.broadcast %cst_58 : f32 to vector<8x128xf32>
    %175 = arith.cmpf ole, %0, %174 : vector<8x128xf32>
    %176 = arith.mulf %170, %173 : vector<8x128xf32>
    %177 = arith.addf %2, %176 : vector<8x128xf32>
    %cst_59 = arith.constant 1.000000e-10 : f32
    %178 = vector.broadcast %cst_59 : f32 to vector<8x128xf32>
    %179 = arith.addf %177, %178 : vector<8x128xf32>
    %cst_60 = arith.constant 1.000000e-10 : f32
    %180 = vector.broadcast %cst_60 : f32 to vector<8x128xf32>
    %181 = arith.addf %170, %180 : vector<8x128xf32>
    %182 = arith.select %175, %179, %181 : vector<8x128xi1>, vector<8x128xf32>
    %183 = math.log %182 : vector<8x128xf32>
    %184 = arith.addf %162, %168 : vector<8x128xf32>
    %cst_61 = arith.constant 0.000000e+00 : f32
    %185 = vector.broadcast %cst_61 : f32 to vector<8x128xf32>
    %186 = arith.select %175, %185, %184 : vector<8x128xi1>, vector<8x128xf32>
    %187 = arith.subf %186, %183 : vector<8x128xf32>
    %cst_62 = arith.constant dense<0.000000e+00> : vector<128xf32>
    %188 = vector.multi_reduction <add>, %187, %cst_62 [0] : vector<8x128xf32> to vector<128xf32>
    %189 = vector.shape_cast %188 : vector<128xf32> to vector<1x128xf32>
    %c0_63 = arith.constant 0 : index
    %c0_64 = arith.constant 0 : index
    %c0_65 = arith.constant 0 : index
    %190 = vector.load %arg6[%c0_63, %c0_64, %c0_65] : memref<1x1x128xf32, #tpu.memory_space<vmem>>, vector<1x1x128xf32>
    %191 = vector.shape_cast %190 : vector<1x1x128xf32> to vector<1x128xf32>
    %192 = vector.shape_cast %189 : vector<1x128xf32> to vector<1x1x128xf32>
    tpu.vector_store %arg6[%c0_63, %c0_64, %c0_65], %192 {strides = array<i32>} : memref<1x1x128xf32, #tpu.memory_space<vmem>>, vector<1x1x128xf32>,
    return
  }
  func.func @transform_0(%arg0: i32) -> (i32, i32) {
    %c0_i32 = arith.constant 0 : i32
    %c0_i32_0 = arith.constant 0 : i32
    return %arg0, %c0_i32 : i32, i32
  }
  func.func @transform_1(%arg0: i32) -> (i32, i32) {
    %c0_i32 = arith.constant 0 : i32
    %c0_i32_0 = arith.constant 0 : i32
    return %arg0, %c0_i32 : i32, i32
  }
  func.func @transform_2(%arg0: i32) -> (i32, i32) {
    %c0_i32 = arith.constant 0 : i32
    %c0_i32_0 = arith.constant 0 : i32
    return %arg0, %c0_i32 : i32, i32
  }
  func.func @transform_3(%arg0: i32) -> (i32, i32) {
    %c0_i32 = arith.constant 0 : i32
    %c0_i32_0 = arith.constant 0 : i32
    return %arg0, %c0_i32 : i32, i32
  }
  func.func @transform_4(%arg0: i32) -> (i32, i32) {
    %c0_i32 = arith.constant 0 : i32
    %c0_i32_0 = arith.constant 0 : i32
    return %arg0, %c0_i32 : i32, i32
  }
  func.func @transform_5(%arg0: i32) -> (i32, i32, i32) {
    %c0_i32 = arith.constant 0 : i32
    %c0_i32_0 = arith.constant 0 : i32
    %c0_i32_1 = arith.constant 0 : i32
    return %arg0, %c0_i32, %c0_i32_0 : i32, i32, i32
  }
}

</mosaic_0001>

<llo_original>
// kernel: tpu_custom_call.1
$region0: #{tpu_custom_call.1}
  #allocation0 [shape = 'u32[]', space=smem, size = 0x4, offset = 0x4, fixed_abs, tag = 'smem constant byte address 0x4 - core index']
  #allocation1 [shape = 'u32[144,128]{1,0:T(1,128)}', space=vmem, size = 0x12000, scoped, tag = 'internal scratch']
  %s0 = inlined_call_operand.vmem [shape: f32[16,128], index: 0, kind: input, shape index: {}]
  %s1 = inlined_call_operand.hbm [shape: f32[16,128], index: 1, kind: input, shape index: {}]
  %s2 = inlined_call_operand.hbm [shape: f32[16,128], index: 2, kind: input, shape index: {}]
  %s3 = inlined_call_operand.hbm [shape: f32[16,128], index: 3, kind: input, shape index: {}]
  %s4 = inlined_call_operand.vmem [shape: f32[16,1], index: 4, kind: input, shape index: {}]
  %s5 = inlined_call_operand.hbm [shape: f32[2,1,128], index: 5, kind: output, shape index: {}]
  %s6 = sld [smem:[#allocation0]]
  $region65: #{tpu_custom_call.1} parent=0
    _
  %s8 = ssub.s32 1, %s6
  %s9 = scalar_select 0, %s8, %s6
  $region1: #{tpu_custom_call.1} parent=0
    #allocation2 [shape = 'u8[8192]{0}', space=vmem, size = 0x2000, scoped, tag = 'input window, operand 1']
    #allocation3 [shape = 's32[2]{0}', space=sflag, size = 0x8, scoped, tag = 'scoped memory for tpu_custom_call.1']
    #allocation4 [shape = 's32[2]{0}', space=sflag, size = 0x8, scoped, tag = 'scoped memory for tpu_custom_call.1']
    #allocation5 [shape = 'u8[8192]{0}', space=vmem, size = 0x2000, scoped, tag = 'input window, operand 2']
    #allocation6 [shape = 's32[2]{0}', space=sflag, size = 0x8, scoped, tag = 'scoped memory for tpu_custom_call.1']
    #allocation7 [shape = 'u8[8192]{0}', space=vmem, size = 0x2000, scoped, tag = 'input window, operand 3']
    #allocation8 [shape = 'u8[1024]{0}', space=vmem, size = 0x400, scoped, tag = 'output window, operand 0']
    %10 = vsyncpa [#allocation3], 0
    %s11 = scalar_lea.sflag [#allocation3], 1
    %12 = vsyncpa %s11, 0
    %13 = vsyncpa [#allocation6], 0
    %s14 = scalar_lea.sflag [#allocation6], 1
    %15 = vsyncpa %s14, 0
    %16 = vsyncpa [#allocation4], 0
    %s17 = scalar_lea.sflag [#allocation4], 1
    %18 = vsyncpa %s17, 0
    loop: start=0, step=1, limit=4
    $region2: #{tpu_custom_call.1} parent=1 // loop_pre_header
      _
    $region3: #{tpu_custom_call.1} parent=1 // loop_header
      %s20 = sphi 0, %s24
      %p21 = scmp.ge.s32.totalorder %s20, 4
      %s30 = sphi 0, %s32
      %s33 = sphi 0, %s30
      %s34 = sphi 0, %s33
      %s50 = sphi 0, %s34
      %s56 = sphi 0, %s58
      %s59 = sphi 0, %s56
      %s60 = sphi 0, %s59
      %s76 = sphi 0, %s60
      %s82 = sphi 0, %s84
      %s85 = sphi 0, %s82
      %s86 = sphi 0, %s85
      %s102 = sphi 0, %s86
      %s108 = sphi 0, %s110
      %s111 = sphi 0, %s108
      %s112 = sphi 0, %s111
      %s128 = sphi 0, %s112
      %s134 = sphi 0, %s136
      %s137 = sphi 0, %s134
      %s138 = sphi 0, %s137
      %s154 = sphi 0, %s138
      %s160 = sphi 0, %s162
      %s163 = sphi 0, %s160
      %s164 = sphi 0, %s163
      %s180 = sphi 0, %s164
    $region4: #{tpu_custom_call.1} parent=1 // loop_header_branch
      %23 = sbr.rel (%p21) target = $region8
    $region5: #{tpu_custom_call.1} parent=1 // loop_body
      %s25 = ssub.s32 %s20, 1
      %s26 = ssub.s32 %s20, 2
      %s27 = sadd.s32 %s20, 1
      %s28 = ssub.s32 %s20, %s27
      %p29 = scmp.eq.s32.totalorder %s28, 0
      %s31 = sadd.s32 %s30, 1
      %s32 = scalar_select %p29, %s30, %s31
      %p35 = pneg %p29
      %p36 = scmp.eq.s32.totalorder %s20, 1
      %p37 = por %p35, %p36
      %p38 = scmp.ne.s32.totalorder %s30, %s33
      %p39 = scmp.eq.s32.totalorder %s20, 0
      %p40 = por %p38, %p39
      %p41 = scmp.ne.s32.totalorder %s30, %s33
      %p42 = scmp.eq.s32.totalorder %s25, 1
      %p43 = por %p41, %p42
      %p44 = scmp.ne.s32.totalorder %s33, %s34
      %p45 = scmp.eq.s32.totalorder %s25, 0
      %p46 = por %p44, %p45
      %p47 = scmp.ne.s32.totalorder %s33, %s34
      %p48 = scmp.eq.s32.totalorder %s26, 1
      %p49 = por %p47, %p48
      %p51 = scmp.ne.s32.totalorder %s34, %s50
      %p52 = scmp.eq.s32.totalorder %s26, 0
      %p53 = por %p51, %p52
      %s54 = ssub.s32 %s20, %s27
      %p55 = scmp.eq.s32.totalorder %s54, 0
      %s57 = sadd.s32 %s56, 1
      %s58 = scalar_select %p55, %s56, %s57
      %p61 = pneg %p55
      %p62 = scmp.eq.s32.totalorder %s20, 1
      %p63 = por %p61, %p62
      %p64 = scmp.ne.s32.totalorder %s56, %s59
      %p65 = scmp.eq.s32.totalorder %s20, 0
      %p66 = por %p64, %p65
      %p67 = scmp.ne.s32.totalorder %s56, %s59
      %p68 = scmp.eq.s32.totalorder %s25, 1
      %p69 = por %p67, %p68
      %p70 = scmp.ne.s32.totalorder %s59, %s60
      %p71 = scmp.eq.s32.totalorder %s25, 0
      %p72 = por %p70, %p71
      %p73 = scmp.ne.s32.totalorder %s59, %s60
      %p74 = scmp.eq.s32.totalorder %s26, 1
      %p75 = por %p73, %p74
      %p77 = scmp.ne.s32.totalorder %s60, %s76
      %p78 = scmp.eq.s32.totalorder %s26, 0
      %p79 = por %p77, %p78
      %s80 = ssub.s32 %s20, %s27
      %p81 = scmp.eq.s32.totalorder %s80, 0
      %s83 = sadd.s32 %s82, 1
      %s84 = scalar_select %p81, %s82, %s83
      %p87 = pneg %p81
      %p88 = scmp.eq.s32.totalorder %s20, 1
      %p89 = por %p87, %p88
      %p90 = scmp.ne.s32.totalorder %s82, %s85
      %p91 = scmp.eq.s32.totalorder %s20, 0
      %p92 = por %p90, %p91
      %p93 = scmp.ne.s32.totalorder %s82, %s85
      %p94 = scmp.eq.s32.totalorder %s25, 1
      %p95 = por %p93, %p94
      %p96 = scmp.ne.s32.totalorder %s85, %s86
      %p97 = scmp.eq.s32.totalorder %s25, 0
      %p98 = por %p96, %p97
      %p99 = scmp.ne.s32.totalorder %s85, %s86
      %p100 = scmp.eq.s32.totalorder %s26, 1
      %p101 = por %p99, %p100
      %p103 = scmp.ne.s32.totalorder %s86, %s102
      %p104 = scmp.eq.s32.totalorder %s26, 0
      %p105 = por %p103, %p104
      %s106 = ssub.s32 %s20, %s27
      %p107 = scmp.eq.s32.totalorder %s106, 0
      %s109 = sadd.s32 %s108, 1
      %s110 = scalar_select %p107, %s108, %s109
      %p113 = pneg %p107
      %p114 = scmp.eq.s32.totalorder %s20, 1
      %p115 = por %p113, %p114
      %p116 = scmp.ne.s32.totalorder %s108, %s111
      %p117 = scmp.eq.s32.totalorder %s20, 0
      %p118 = por %p116, %p117
      %p119 = scmp.ne.s32.totalorder %s108, %s111
      %p120 = scmp.eq.s32.totalorder %s25, 1
      %p121 = por %p119, %p120
      %p122 = scmp.ne.s32.totalorder %s111, %s112
      %p123 = scmp.eq.s32.totalorder %s25, 0
      %p124 = por %p122, %p123
      %p125 = scmp.ne.s32.totalorder %s111, %s112
      %p126 = scmp.eq.s32.totalorder %s26, 1
      %p127 = por %p125, %p126
      %p129 = scmp.ne.s32.totalorder %s112, %s128
      %p130 = scmp.eq.s32.totalorder %s26, 0
      %p131 = por %p129, %p130
      %s132 = ssub.s32 %s20, %s27
      %p133 = scmp.eq.s32.totalorder %s132, 0
      %s135 = sadd.s32 %s134, 1
      %s136 = scalar_select %p133, %s134, %s135
      %p139 = pneg %p133
      %p140 = scmp.eq.s32.totalorder %s20, 1
      %p141 = por %p139, %p140
      %p142 = scmp.ne.s32.totalorder %s134, %s137
      %p143 = scmp.eq.s32.totalorder %s20, 0
      %p144 = por %p142, %p143
      %p145 = scmp.ne.s32.totalorder %s134, %s137
      %p146 = scmp.eq.s32.totalorder %s25, 1
      %p147 = por %p145, %p146
      %p148 = scmp.ne.s32.totalorder %s137, %s138
      %p149 = scmp.eq.s32.totalorder %s25, 0
      %p150 = por %p148, %p149
      %p151 = scmp.ne.s32.totalorder %s137, %s138
      %p152 = scmp.eq.s32.totalorder %s26, 1
      %p153 = por %p151, %p152
      %p155 = scmp.ne.s32.totalorder %s138, %s154
      %p156 = scmp.eq.s32.totalorder %s26, 0
      %p157 = por %p155, %p156
      %s158 = ssub.s32 %s20, %s27
      %p159 = scmp.eq.s32.totalorder %s158, 0
      %s161 = sadd.s32 %s160, 1
      %s162 = scalar_select %p159, %s160, %s161
      %p165 = pneg %p159
      %p166 = scmp.eq.s32.totalorder %s20, 1
      %p167 = por %p165, %p166
      %p168 = scmp.ne.s32.totalorder %s160, %s163
      %p169 = scmp.eq.s32.totalorder %s20, 0
      %p170 = por %p168, %p169
      %p171 = scmp.ne.s32.totalorder %s160, %s163
      %p172 = scmp.eq.s32.totalorder %s25, 1
      %p173 = por %p171, %p172
      %p174 = scmp.ne.s32.totalorder %s163, %s164
      %p175 = scmp.eq.s32.totalorder %s25, 0
      %p176 = por %p174, %p175
      %p177 = scmp.ne.s32.totalorder %s163, %s164
      %p178 = scmp.eq.s32.totalorder %s26, 1
      %p179 = por %p177, %p178
      %p181 = scmp.ne.s32.totalorder %s164, %s180
      %p182 = scmp.eq.s32.totalorder %s26, 0
      %p183 = por %p181, %p182
      %p184 = scmp.le.s32.totalorder 1, %s20
      %p185 = scmp.lt.s32.totalorder %s20, 3
      %p186 = pnand %p184, %p185
      %p187 = pneg %p186
      // Predicated region
      $region9: #{tpu_custom_call.1} parent=5 // pred_check
        _
      $region10: #{tpu_custom_call.1} parent=5 // pred_check_branch
        %189 = sbr.rel (%p186) target = $region12
      $region11: #{tpu_custom_call.1} parent=5 // pred_region
        %s190 = ssub.s32 %s20, 1
      $region12: #{tpu_custom_call.1} parent=5 // pred_fallthru
        _
      %p191 = scmp.lt.s32.totalorder %s20, 2
      // Predicated region
      $region13: #{tpu_custom_call.1} parent=5 // pred_check
        %p192 = pneg %p191
      $region14: #{tpu_custom_call.1} parent=5 // pred_check_branch
        %194 = sbr.rel (%p192) target = $region16
      $region15: #{tpu_custom_call.1} parent=5 // pred_region
        // Predicated region
        $region17: #{tpu_custom_call.1} parent=15 // pred_check
          %p195 = pneg %p40
        $region18: #{tpu_custom_call.1} parent=15 // pred_check_branch
          %197 = sbr.rel (%p195) target = $region20
        $region19: #{tpu_custom_call.1} parent=15 // pred_region
          %p198 = scmp.lt.s32.totalorder %s20, 1
          %s199 = scalar_select %p198, %s20, 1
          %s200 = smul.addr %s199, 8
          %s201 = scalar_lea.vmem %s0, %s200
        $region20: #{tpu_custom_call.1} parent=15 // pred_fallthru
          _
        // Predicated region
        $region21: #{tpu_custom_call.1} parent=15 // pred_check
          %p202 = pneg %p66
        $region22: #{tpu_custom_call.1} parent=15 // pred_check_branch
          %204 = sbr.rel (%p202) target = $region24
        $region23: #{tpu_custom_call.1} parent=15 // pred_region
          %s205 = sand.u32 %s56, 1
          %s206 = scalar_lea.sflag [#allocation3], %s205
          %s207 = sand.u32 %s56, 1
          %s208 = smul.addr %s207, 8
          %s209 = scalar_lea.vmem [#allocation2], %s208
          %s211 = ssub.s32 128, 128
          %212 = vsyncadd %s206, %s211
          %s213 = smul.addr %s20, 128
          %s214 = scalar_lea.hbm %s1, %s213
          %s216 = sshll.u32 %s209, 4
          %s217 = int_to_ptr.vmem [resolvable:$true] %s216
          %219 = dma.hbm_to_vmem [thread:$0]  %s214, 128, %s217, %s206
        $region24: #{tpu_custom_call.1} parent=15 // pred_fallthru
          _
        // Predicated region
        $region25: #{tpu_custom_call.1} parent=15 // pred_check
          %p220 = pneg %p92
        $region26: #{tpu_custom_call.1} parent=15 // pred_check_branch
          %222 = sbr.rel (%p220) target = $region28
        $region27: #{tpu_custom_call.1} parent=15 // pred_region
          %s223 = sand.u32 %s20, 1
          %s224 = scalar_lea.sflag [#allocation6], %s223
          %s225 = sand.u32 %s82, 1
          %s226 = smul.addr %s225, 8
          %s227 = scalar_lea.vmem [#allocation5], %s226
          %s229 = ssub.s32 128, 128
          %230 = vsyncadd %s224, %s229
          %s231 = smul.addr %s20, 128
          %s232 = scalar_lea.hbm %s2, %s231
          %s234 = sshll.u32 %s227, 4
          %s235 = int_to_ptr.vmem [resolvable:$true] %s234
          %237 = dma.hbm_to_vmem [thread:$0]  %s232, 128, %s235, %s224
        $region28: #{tpu_custom_call.1} parent=15 // pred_fallthru
          _
        // Predicated region
        $region29: #{tpu_custom_call.1} parent=15 // pred_check
          %p238 = pneg %p118
        $region30: #{tpu_custom_call.1} parent=15 // pred_check_branch
          %240 = sbr.rel (%p238) target = $region32
        $region31: #{tpu_custom_call.1} parent=15 // pred_region
          %s241 = sand.u32 %s20, 1
          %s242 = scalar_lea.sflag [#allocation6], %s241
          %s243 = sand.u32 %s108, 1
          %s244 = smul.addr %s243, 8
          %s245 = scalar_lea.vmem [#allocation7], %s244
          %s247 = ssub.s32 128, 128
          %248 = vsyncadd %s242, %s247
          %s249 = smul.addr %s20, 128
          %s250 = scalar_lea.hbm %s3, %s249
          %s252 = sshll.u32 %s245, 4
          %s253 = int_to_ptr.vmem [resolvable:$true] %s252
          %255 = dma.hbm_to_vmem [thread:$0]  %s250, 128, %s253, %s242
        $region32: #{tpu_custom_call.1} parent=15 // pred_fallthru
          _
        // Predicated region
        $region33: #{tpu_custom_call.1} parent=15 // pred_check
          %p256 = pneg %p144
        $region34: #{tpu_custom_call.1} parent=15 // pred_check_branch
          %258 = sbr.rel (%p256) target = $region36
        $region35: #{tpu_custom_call.1} parent=15 // pred_region
          %p259 = scmp.lt.s32.totalorder %s20, 1
          %s260 = scalar_select %p259, %s20, 1
          %s261 = smul.addr %s260, 8
          %s262 = scalar_lea.vmem %s4, %s261
        $region36: #{tpu_custom_call.1} parent=15 // pred_fallthru
          _
      $region16: #{tpu_custom_call.1} parent=5 // pred_fallthru
        _
      %p263 = scmp.le.s32.totalorder 1, %s20
      %p264 = scmp.lt.s32.totalorder %s20, 3
      %p265 = pnand %p263, %p264
      %p266 = pneg %p265
      // Predicated region
      $region37: #{tpu_custom_call.1} parent=5 // pred_check
        _
      $region38: #{tpu_custom_call.1} parent=5 // pred_check_branch
        %268 = sbr.rel (%p265) target = $region40
      $region39: #{tpu_custom_call.1} parent=5 // pred_region
        %s269 = ssub.s32 %s20, 1
        %s270 = sand.u32 %s59, 1
        %s271 = scalar_lea.sflag [#allocation3], %s270
        %s272 = sand.u32 %s59, 1
        %s273 = smul.addr %s272, 8
        %s274 = scalar_lea.vmem [#allocation2], %s273
        // Predicated region
        $region41: #{tpu_custom_call.1} parent=39 // pred_check
          %p275 = pneg %p72
        $region42: #{tpu_custom_call.1} parent=39 // pred_check_branch
          %277 = sbr.rel (%p275) target = $region44
        $region43: #{tpu_custom_call.1} parent=39 // pred_region
          %278 = dma.done %s271, 128
        $region44: #{tpu_custom_call.1} parent=39 // pred_fallthru
          _
        %s279 = sand.u32 %s25, 1
        %s280 = scalar_lea.sflag [#allocation6], %s279
        %s281 = sand.u32 %s85, 1
        %s282 = smul.addr %s281, 8
        %s283 = scalar_lea.vmem [#allocation5], %s282
        // Predicated region
        $region45: #{tpu_custom_call.1} parent=39 // pred_check
          %p284 = pneg %p98
        $region46: #{tpu_custom_call.1} parent=39 // pred_check_branch
          %286 = sbr.rel (%p284) target = $region48
        $region47: #{tpu_custom_call.1} parent=39 // pred_region
          %287 = dma.done %s280, 128
        $region48: #{tpu_custom_call.1} parent=39 // pred_fallthru
          _
        %s288 = sand.u32 %s25, 1
        %s289 = scalar_lea.sflag [#allocation6], %s288
        %s290 = sand.u32 %s111, 1
        %s291 = smul.addr %s290, 8
        %s292 = scalar_lea.vmem [#allocation7], %s291
        // Predicated region
        $region49: #{tpu_custom_call.1} parent=39 // pred_check
          %p293 = pneg %p124
        $region50: #{tpu_custom_call.1} parent=39 // pred_check_branch
          %295 = sbr.rel (%p293) target = $region52
        $region51: #{tpu_custom_call.1} parent=39 // pred_region
          %296 = dma.done %s289, 128
        $region52: #{tpu_custom_call.1} parent=39 // pred_fallthru
          _
        %p297 = scmp.lt.s32.totalorder %s25, 1
        %s298 = scalar_select %p297, %s25, 1
        %s299 = smul.addr %s298, 8
        %s300 = scalar_lea.vmem %s0, %s299
        %p301 = pneg %p46
        %p302 = pneg %p43
        %s303 = sand.u32 %s59, 1
        %s304 = scalar_lea.sflag [#allocation3], %s303
        %s305 = sand.u32 %s59, 1
        %s306 = smul.addr %s305, 8
        %s307 = scalar_lea.vmem [#allocation2], %s306
        %p308 = pneg %p72
        %p309 = pneg %p69
        %s310 = sand.u32 %s25, 1
        %s311 = scalar_lea.sflag [#allocation6], %s310
        %s312 = sand.u32 %s85, 1
        %s313 = smul.addr %s312, 8
        %s314 = scalar_lea.vmem [#allocation5], %s313
        %p315 = pneg %p98
        %p316 = pneg %p95
        %s317 = sand.u32 %s25, 1
        %s318 = scalar_lea.sflag [#allocation6], %s317
        %s319 = sand.u32 %s111, 1
        %s320 = smul.addr %s319, 8
        %s321 = scalar_lea.vmem [#allocation7], %s320
        %p322 = pneg %p124
        %p323 = pneg %p121
        %p324 = scmp.lt.s32.totalorder %s25, 1
        %s325 = scalar_select %p324, %s25, 1
        %s326 = smul.addr %s325, 8
        %s327 = scalar_lea.vmem %s4, %s326
        %p328 = pneg %p150
        %p329 = pneg %p147
        %p330 = pneg %p176
        %p331 = pneg %p173
        %s332 = sand.u32 %s163, 1
        %s333 = scalar_lea.sflag [#allocation4], %s332
        %s334 = sand.u32 %s163, 1
        %s335 = scalar_lea.vmem [#allocation8], %s334
        %p336 = scmp.lt.s32.totalorder %s25, 1
        %s337 = scalar_select %p336, %s25, 1
        %s338 = smul.addr %s337, 8
        %s339 = scalar_lea.vmem %s0, %s338
        %p340 = scmp.lt.s32.totalorder %s25, 1
        %s341 = scalar_select %p340, %s25, 1
        %s342 = smul.addr %s341, 8
        %s343 = scalar_lea.vmem %s4, %s342
        %v344 = vld [vmem:[%s339] sm:$0xff]
        %v345 = vld [vmem:[%s283] sm:$0xff]
        %v346 = vld [vmem:[%s292] sm:$0xff]
        %v347 = vld [vmem:[%s274] sm:$0xff]
        %v348 = vld [vmem:[%s343] sm:$0xff]
        %350 = vset.pattern.permute.xlu0 0
        %351 = vperm.xlu0 %350, %v348
        %v352 = vpop.permute.xlu0 %351
        %v354 = vmul.f32 %v347, %v352
        %v355 = vadd.f32 %v345, 1e-10
        %v356 = vadd.f32 %v344, 1.0
        %v357 = vadd.f32 %v344, %v355
        %v358 = vlog2.pop %v355
        %v359 = vmul.f32 %v358, 0.6931472
        %v360 = vadd.f32 %v354, 1e-10
        %v361 = vlog2.pop %v360
        %v362 = vmul.f32 %v361, 0.6931472
        %v363 = vadd.f32 %v355, %v354
        %v364 = vlog2.pop %v363
        %v365 = vmul.f32 %v364, 0.6931472
        %v366 = vmul.f32 %v355, %v355
        %v367 = vmul.f32 %v355, -10.325229
        %v368 = vadd.f32 %v367, 65.854866
        %v369 = vmul.f32 %v355, 3.0
        %v370 = vadd.f32 %v366, %v369
        %v371 = vadd.f32 %v370, 2.0
        %v372 = vrcp.pop %v371
        %v373 = vmul.f32 %v368, %v372
        %v374 = vadd.f32 %v373, 1.0
        %v375 = vmul.f32 %v355, 22.782358
        %v376 = vadd.f32 %v375, 92.361176
        %v377 = vmul.f32 %v355, 7.0
        %v378 = vadd.f32 %v366, %v377
        %v379 = vadd.f32 %v378, 12.0
        %v380 = vrcp.pop %v379
        %v381 = vmul.f32 %v376, %v380
        %v382 = vadd.f32 %v374, %v381
        %v383 = vmul.f32 %v355, 0.0012032557
        %v384 = vadd.f32 %v383, 0.0072249295
        %v385 = vmul.f32 %v355, 11.0
        %v386 = vadd.f32 %v366, %v385
        %v387 = vadd.f32 %v386, 30.0
        %v388 = vrcp.pop %v387
        %v389 = vmul.f32 %v384, %v388
        %v390 = vadd.f32 %v382, %v389
        %v391 = vmul.f32 %v356, %v356
        %v392 = vmul.f32 %v356, -10.325229
        %v393 = vadd.f32 %v392, 65.854866
        %v394 = vmul.f32 %v356, 3.0
        %v395 = vadd.f32 %v391, %v394
        %v396 = vadd.f32 %v395, 2.0
        %v397 = vrcp.pop %v396
        %v398 = vmul.f32 %v393, %v397
        %v399 = vadd.f32 %v398, 1.0
        %v400 = vmul.f32 %v356, 22.782358
        %v401 = vadd.f32 %v400, 92.361176
        %v402 = vmul.f32 %v356, 7.0
        %v403 = vadd.f32 %v391, %v402
        %v404 = vadd.f32 %v403, 12.0
        %v405 = vrcp.pop %v404
        %v406 = vmul.f32 %v401, %v405
        %v407 = vadd.f32 %v399, %v406
        %v408 = vmul.f32 %v356, 0.0012032557
        %v409 = vadd.f32 %v408, 0.0072249295
        %v410 = vmul.f32 %v356, 11.0
        %v411 = vadd.f32 %v391, %v410
        %v412 = vadd.f32 %v411, 30.0
        %v413 = vrcp.pop %v412
        %v414 = vmul.f32 %v409, %v413
        %v415 = vadd.f32 %v407, %v414
        %v416 = vmul.f32 %v390, %v415
        %v417 = vmul.f32 %v357, %v357
        %v418 = vmul.f32 %v357, -10.325229
        %v419 = vadd.f32 %v418, 65.854866
        %v420 = vmul.f32 %v357, 3.0
        %v421 = vadd.f32 %v417, %v420
        %v422 = vadd.f32 %v421, 2.0
        %v423 = vrcp.pop %v422
        %v424 = vmul.f32 %v419, %v423
        %v425 = vadd.f32 %v424, 1.0
        %v426 = vmul.f32 %v357, 22.782358
        %v427 = vadd.f32 %v426, 92.361176
        %v428 = vmul.f32 %v357, 7.0
        %v429 = vadd.f32 %v417, %v428
        %v430 = vadd.f32 %v429, 12.0
        %v431 = vrcp.pop %v430
        %v432 = vmul.f32 %v427, %v431
        %v433 = vadd.f32 %v425, %v432
        %v434 = vmul.f32 %v357, 0.0012032557
        %v435 = vadd.f32 %v434, 0.0072249295
        %v436 = vmul.f32 %v357, 11.0
        %v437 = vadd.f32 %v417, %v436
        %v438 = vadd.f32 %v437, 30.0
        %v439 = vrcp.pop %v438
        %v440 = vmul.f32 %v435, %v439
        %v441 = vadd.f32 %v433, %v440
        %v442 = vrcp.pop %v441
        %v443 = vmul.f32 %v416, %v442
        %v444 = vmul.f32 %v443, %v357
        %v445 = vmul.f32 %v355, %v356
        %v446 = vrcp.pop %v445
        %v447 = vmul.f32 %v444, %v446
        %v448 = vadd.f32 %v355, 0.5
        %v449 = vadd.f32 %v355, 5.5
        %v450 = vlog2.pop %v449
        %v451 = vmul.f32 %v450, 0.6931472
        %v452 = vmul.f32 %v448, %v451
        %v453 = vadd.f32 %v356, 0.5
        %v454 = vadd.f32 %v356, 5.5
        %v455 = vlog2.pop %v454
        %v456 = vmul.f32 %v455, 0.6931472
        %v457 = vmul.f32 %v453, %v456
        %v458 = vadd.f32 %v452, %v457
        %v459 = vadd.f32 %v357, 0.5
        %v460 = vadd.f32 %v357, 5.5
        %v461 = vlog2.pop %v460
        %v462 = vmul.f32 %v461, 0.6931472
        %v463 = vmul.f32 %v459, %v462
        %v464 = vsub.f32 %v458, %v463
        %v465 = vlog2.pop %v447
        %v466 = vmul.f32 %v465, 0.6931472
        %v467 = vadd.f32 %v464, %v466
        %v468 = vadd.f32 %v467, -5.5810614
        %v469 = vadd.f32 %v345, %v344
        %v470 = vsub.f32 %v365, %v359
        %v471 = vmul.f32 %v469, %v470
        %v472 = vsub.f32 %v359, %v362
        %v473 = vmul.f32 %v344, %v472
        %v474 = vadd.f32 %v471, %v473
        %v475 = vsub.f32 1.0, %v346
        %v476 = vsub.f32 %v359, %v365
        %v477 = vmul.f32 %v345, %v476
        %v478 = vmul.f32 %v477, 1.442695
        %v479 = vpow.pop %v478
        %vm480 = vcmp.le.f32.partialorder %v344, 1e-05
        %v481 = vmul.f32 %v475, %v479
        %v482 = vadd.f32 %v346, %v481
        %v483 = vadd.f32 %v482, 1e-10
        %v484 = vadd.f32 %v475, 1e-10
        %v485 = vsel %vm480, %v483, %v484
        %v486 = vlog2.pop %v485
        %v487 = vmul.f32 %v486, 0.6931472
        %v488 = vadd.f32 %v468, %v474
        %v489 = vsel %vm480, 0.0, %v488
        %v490 = vsub.f32 %v489, %v487
        %v491 = vrot.slane %v490, 4
        %v492 = vadd.f32 %v490, %v491
        %v493 = vrot.slane %v492, 2
        %v494 = vadd.f32 %v492, %v493
        %v495 = vrot.slane %v494, 1
        %v496 = vadd.f32 %v494, %v495
        %497 = vst [vmem:[%s335] sm:$0x1] %v496
        %s498 = sand.u32 %s163, 1
        %s499 = scalar_lea.sflag [#allocation4], %s498
        %s500 = sand.u32 %s163, 1
        %s501 = scalar_lea.vmem [#allocation8], %s500
        // Predicated region
        $region53: #{tpu_custom_call.1} parent=39 // pred_check
          %p502 = pneg %p173
        $region54: #{tpu_custom_call.1} parent=39 // pred_check_branch
          %504 = sbr.rel (%p502) target = $region56
        $region55: #{tpu_custom_call.1} parent=39 // pred_region
          %s506 = ssub.s32 16, 16
          %507 = vsyncadd %s499, %s506
          %s508 = smul.addr %s25, 16
          %s509 = scalar_lea.hbm %s5, %s508
          %s511 = sshll.u32 %s501, 4
          %s512 = int_to_ptr.vmem [resolvable:$true] %s511
          %514 = dma.vmem_to_hbm [thread:$0]  %s512, 16, %s509, %s499
        $region56: #{tpu_custom_call.1} parent=39 // pred_fallthru
          _
      $region40: #{tpu_custom_call.1} parent=5 // pred_fallthru
        _
      %p515 = scmp.le.s32.totalorder 2, %s20
      // Predicated region
      $region57: #{tpu_custom_call.1} parent=5 // pred_check
        %p516 = pneg %p515
      $region58: #{tpu_custom_call.1} parent=5 // pred_check_branch
        %518 = sbr.rel (%p516) target = $region60
      $region59: #{tpu_custom_call.1} parent=5 // pred_region
        %s519 = ssub.s32 %s20, 2
        // Predicated region
        $region61: #{tpu_custom_call.1} parent=59 // pred_check
          %p520 = pneg %p179
        $region62: #{tpu_custom_call.1} parent=59 // pred_check_branch
          %522 = sbr.rel (%p520) target = $region64
        $region63: #{tpu_custom_call.1} parent=59 // pred_region
          %s523 = sand.u32 %s164, 1
          %s524 = scalar_lea.sflag [#allocation4], %s523
          %s525 = sand.u32 %s164, 1
          %s526 = scalar_lea.vmem [#allocation8], %s525
          %527 = dma.done %s524, 16
        $region64: #{tpu_custom_call.1} parent=59 // pred_fallthru
          _
      $region60: #{tpu_custom_call.1} parent=5 // pred_fallthru
        _
    $region6: #{tpu_custom_call.1} parent=1 // loop_footer
      %s24 = sadd.s32 1, %s20
    $region7: #{tpu_custom_call.1} parent=1 // loop_footer_branch
      %19 = sbr.rel target = $region3
    $region8: #{tpu_custom_call.1} parent=1 // loop_exit
      _
    %528 = vsyncpa [#allocation3], 1
    %s529 = scalar_lea.sflag [#allocation3], 1
    %530 = vsyncpa %s529, 1
    %531 = vsyncpa [#allocation6], 1
    %s532 = scalar_lea.sflag [#allocation6], 1
    %533 = vsyncpa %s532, 1
    %534 = vsyncpa [#allocation4], 1
    %s535 = scalar_lea.sflag [#allocation4], 1
    %536 = vsyncpa %s535, 1

</llo_original>
